<compile_context>
chip_gen: v7x
topology: tpu7x:2x2x1
jax: 0.10.0
libtpu: 0.0.40
codegen_flags: <defaults>
</compile_context>

<pallas_src>
import functools

import jax
import jax.numpy as jnp
from jax.experimental import pallas as pl
from jax.experimental.pallas import tpu as pltpu

_LANES = 128
_MAX_TILE_ROWS = 1024  # 1024 x 128 x 4B = 512 KiB per f32 buffer


def _dropout_kernel(x_ref, u_ref, o_ref, *, p):
    x = x_ref[...]
    # keep element iff uniform >= p  (keep prob = 1 - p)
    keep = u_ref[...] >= jnp.float32(p)
    scale = jnp.asarray(1.0 / (1.0 - p), dtype=x.dtype)
    o_ref[...] = jnp.where(keep, x * scale, jnp.zeros_like(x))


def _round_up(n, m):
    return ((n + m - 1) // m) * m


def identity_forward(x, *, dropout=0.1, training=False, key=None):
    """Pallas equivalent of Identity.forward(x)."""
    p = float(dropout) if dropout else 0.0

    # Eval mode / no dropout: true no-op, skip the kernel entirely.
    if (not training) or p <= 0.0:
        return x

    # p >= 1: PyTorch dropout returns all zeros; avoid 1/(1-p) = inf.
    if p >= 1.0:
        return jnp.zeros_like(x)

    if key is None:
        key = jax.random.PRNGKey(0)

    orig_shape = x.shape
    total = x.size

    # Flatten + pad to a lane-dense (rows, 128) slab; choose a row tile that
    # divides the padded row count.
    rows = pl.cdiv(total, _LANES)
    tile_rows = rows if rows <= _MAX_TILE_ROWS else _MAX_TILE_ROWS
    padded_rows = _round_up(rows, tile_rows)
    padded_total = padded_rows * _LANES

    flat = x.reshape(-1)
    if padded_total != total:
        flat = jnp.pad(flat, (0, padded_total - total))
    x2 = flat.reshape(padded_rows, _LANES)

    # Uniform randoms generated outside the kernel (one per element).
    u2 = jax.random.uniform(key, x2.shape, dtype=jnp.float32)

    kernel = functools.partial(_dropout_kernel, p=p)
    grid = padded_rows // tile_rows

    out2 = pl.pallas_call(
        kernel,
        out_shape=jax.ShapeDtypeStruct(x2.shape, x2.dtype),
        grid=(grid,),
        in_specs=[
            pl.BlockSpec((tile_rows, _LANES), lambda i: (i, 0)),
            pl.BlockSpec((tile_rows, _LANES), lambda i: (i, 0)),
        ],
        out_specs=pl.BlockSpec((tile_rows, _LANES), lambda i: (i, 0)),
        compiler_params=pltpu.CompilerParams(
            dimension_semantics=("parallel",)
        ),
    )(x2, u2)

    return out2.reshape(-1)[:total].reshape(orig_shape)


if __name__ == "__main__":
    key = jax.random.PRNGKey(0)
    x = jax.random.normal(key, (2, 4, 16, 16), dtype=jnp.float32)

    # Eval mode: exact identity, no kernel launch.
    y_eval = identity_forward(x, dropout=0.1, training=False)
    jax.block_until_ready(y_eval)
    assert y_eval.shape == x.shape and y_eval.dtype == x.dtype
    assert bool(jnp.all(y_eval == x))

    # dropout=0 (falsy): identity even in training.
    y_nop = identity_forward(x, dropout=0.0, training=True)
    jax.block_until_ready(y_nop)
    assert bool(jnp.all(y_nop == x))

    # Train mode: exercise the Pallas dropout path.
    p = 0.1
    drop_key = jax.random.PRNGKey(42)
    y_train = identity_forward(x, dropout=p, training=True, key=drop_key)
    jax.block_until_ready(y_train)
    assert y_train.shape == x.shape and y_train.dtype == x.dtype
    # Every output element is either 0 or x * 1/(1-p).
    scaled = x / (1.0 - p)
    ok = jnp.logical_or(
        y_train == 0.0,
        jnp.isclose(y_train, scaled, rtol=1e-5, atol=1e-6),
    )
    assert bool(jnp.all(ok))
    # Some elements were kept (sanity that it's not all zeros).
    assert bool(jnp.any(y_train != 0.0))

    # p >= 1: all zeros, like PyTorch.
    y_all_drop = identity_forward(x, dropout=1.0, training=True, key=drop_key)
    jax.block_until_ready(y_all_drop)
    assert bool(jnp.all(y_all_drop == 0.0))

    print("KERNEL_OK")
</pallas_src>

<mosaic_0001>
module attributes {stable_mosaic.version = 11 : i64} {
  func.func @_dropout_kernel(%arg0: i32, %arg1: memref<16x128xf32, #tpu.memory_space<vmem>>, %arg2: memref<16x128xf32, #tpu.memory_space<vmem>>, %arg3: memref<16x128xf32, #tpu.memory_space<vmem>>) attributes {dimension_semantics = [#tpu.dimension_semantics<parallel>], iteration_bounds = array<i64: 1>, scalar_prefetch = 0 : i64, scratch_operands = 0 : i64, tpu.core_type = #tpu.core_type<tc>, window_params = [{transform_indices = @transform_0, window_bounds = array<i64: 16, 128>}, {transform_indices = @transform_1, window_bounds = array<i64: 16, 128>}, {transform_indices = @transform_2, window_bounds = array<i64: 16, 128>}]} {
    %c0 = arith.constant 0 : index
    %c0_0 = arith.constant 0 : index
    %0 = vector.load %arg1[%c0, %c0_0] : memref<16x128xf32, #tpu.memory_space<vmem>>, vector<16x128xf32>
    %c0_1 = arith.constant 0 : index
    %c0_2 = arith.constant 0 : index
    %1 = vector.load %arg2[%c0_1, %c0_2] : memref<16x128xf32, #tpu.memory_space<vmem>>, vector<16x128xf32>
    %cst = arith.constant 1.000000e-01 : f32
    %2 = vector.broadcast %cst : f32 to vector<16x128xf32>
    %3 = arith.cmpf oge, %1, %2 : vector<16x128xf32>
    %cst_3 = arith.constant 1.11111116 : f32
    %4 = vector.broadcast %cst_3 : f32 to vector<16x128xf32>
    %5 = arith.mulf %0, %4 : vector<16x128xf32>
    %cst_4 = arith.constant 0.000000e+00 : f32
    %6 = vector.broadcast %cst_4 : f32 to vector<16x128xf32>
    %7 = arith.select %3, %5, %6 : vector<16x128xi1>, vector<16x128xf32>
    %c0_5 = arith.constant 0 : index
    %c0_6 = arith.constant 0 : index
    %8 = vector.load %arg3[%c0_5, %c0_6] : memref<16x128xf32, #tpu.memory_space<vmem>>, vector<16x128xf32>
    tpu.vector_store %arg3[%c0_5, %c0_6], %7 {strides = array<i32>} : memref<16x128xf32, #tpu.memory_space<vmem>>, vector<16x128xf32>,
    return
  }
  func.func @transform_0(%arg0: i32) -> (i32, i32) {
    %c0_i32 = arith.constant 0 : i32
    %c0_i32_0 = arith.constant 0 : i32
    return %arg0, %c0_i32 : i32, i32
  }
  func.func @transform_1(%arg0: i32) -> (i32, i32) {
    %c0_i32 = arith.constant 0 : i32
    %c0_i32_0 = arith.constant 0 : i32
    return %arg0, %c0_i32 : i32, i32
  }
  func.func @transform_2(%arg0: i32) -> (i32, i32) {
    %c0_i32 = arith.constant 0 : i32
    %c0_i32_0 = arith.constant 0 : i32
    return %arg0, %c0_i32 : i32, i32
  }
}

</mosaic_0001>

<llo_original>
// kernel: tpu_custom_call.1
$region0: #{tpu_custom_call.1}
  #allocation0 [shape = 'u32[]', space=smem, size = 0x4, offset = 0x4, fixed_abs, tag = 'smem constant byte address 0x4 - core index']
  #allocation1 [shape = 'u32[144,128]{1,0:T(1,128)}', space=vmem, size = 0x12000, scoped, tag = 'internal scratch']
  %s0 = inlined_call_operand.hbm [shape: f32[16,128], index: 0, kind: input, shape index: {}]
  %s1 = inlined_call_operand.hbm [shape: f32[16,128], index: 1, kind: input, shape index: {}]
  %s2 = inlined_call_operand.hbm [shape: f32[16,128], index: 2, kind: output, shape index: {}]
  %s3 = sld [smem:[#allocation0]]
  $region26: #{tpu_custom_call.1} parent=0
    _
  %s5 = ssub.s32 1, %s3
  %s6 = scalar_select 0, %s5, %s3
  $region1: #{tpu_custom_call.1} parent=0
    #allocation2 [shape = 'u8[8192]{0}', space=vmem, size = 0x2000, scoped, tag = 'input window, operand 0, single buffered']
    #allocation3 [shape = 's32[1]{0}', space=sflag, size = 0x4, scoped, tag = 'scoped memory for tpu_custom_call.1']
    #allocation4 [shape = 's32[1]{0}', space=sflag, size = 0x4, scoped, tag = 'scoped memory for tpu_custom_call.1']
    #allocation5 [shape = 'u8[8192]{0}', space=vmem, size = 0x2000, scoped, tag = 'input window, operand 1, single buffered']
    #allocation6 [shape = 's32[1]{0}', space=sflag, size = 0x4, scoped, tag = 'scoped memory for tpu_custom_call.1']
    #allocation7 [shape = 'u8[8192]{0}', space=vmem, size = 0x2000, scoped, tag = 'output window, operand 0, single buffered']
    %7 = vsyncpa [#allocation3], 0
    %8 = vsyncpa [#allocation6], 0
    %9 = vsyncpa [#allocation4], 0
    // Predicated region
    $region2: #{tpu_custom_call.1} parent=1 // pred_check
      _
    $region3: #{tpu_custom_call.1} parent=1 // pred_check_branch
      %11 = sbr.rel (0) target = $region5
    $region4: #{tpu_custom_call.1} parent=1 // pred_region
      %s13 = ssub.s32 256, 256
      %14 = vsyncadd [#allocation3], %s13
      %s15 = sshll.u32 [#allocation2], 4
      %s16 = int_to_ptr.vmem [resolvable:$true] %s15
      %21 = dma.hbm_to_vmem [thread:$0]  %s0, 256, %s16, [#allocation3], 128, 128, 8
    $region5: #{tpu_custom_call.1} parent=1 // pred_fallthru
      _
    // Predicated region
    $region6: #{tpu_custom_call.1} parent=1 // pred_check
      _
    $region7: #{tpu_custom_call.1} parent=1 // pred_check_branch
      %23 = sbr.rel (0) target = $region9
    $region8: #{tpu_custom_call.1} parent=1 // pred_region
      %s25 = ssub.s32 256, 256
      %26 = vsyncadd [#allocation6], %s25
      %s27 = sshll.u32 [#allocation5], 4
      %s28 = int_to_ptr.vmem [resolvable:$true] %s27
      %33 = dma.hbm_to_vmem [thread:$0]  %s1, 256, %s28, [#allocation6], 128, 128, 8
    $region9: #{tpu_custom_call.1} parent=1 // pred_fallthru
      _
    // Predicated region
    $region10: #{tpu_custom_call.1} parent=1 // pred_check
      _
    $region11: #{tpu_custom_call.1} parent=1 // pred_check_branch
      %35 = sbr.rel (0) target = $region13
    $region12: #{tpu_custom_call.1} parent=1 // pred_region
      %36 = dma.done [#allocation3], 256
    $region13: #{tpu_custom_call.1} parent=1 // pred_fallthru
      _
    // Predicated region
    $region14: #{tpu_custom_call.1} parent=1 // pred_check
      _
    $region15: #{tpu_custom_call.1} parent=1 // pred_check_branch
      %38 = sbr.rel (0) target = $region17
    $region16: #{tpu_custom_call.1} parent=1 // pred_region
      %39 = dma.done [#allocation6], 256
    $region17: #{tpu_custom_call.1} parent=1 // pred_fallthru
      _
    %v40 = vld [vmem:[#allocation2] sm:$0xff]
    %v41 = vld [vmem:[#allocation2 + $0x8] sm:$0xff]
    %v42 = vld [vmem:[#allocation5] sm:$0xff]
    %v43 = vld [vmem:[#allocation5 + $0x8] sm:$0xff]
    %vm44 = vcmp.ge.f32.partialorder %v42, 0.1
    %vm45 = vcmp.ge.f32.partialorder %v43, 0.1
    %v46 = vmul.f32 %v40, 1.1111112
    %v47 = vmul.f32 %v41, 1.1111112
    %v48 = vsel %vm44, %v46, 0.0
    %v49 = vsel %vm45, %v47, 0.0
    %50 = vst [vmem:[#allocation7] sm:$0xff] %v48
    %51 = vst [vmem:[#allocation7 + $0x8] sm:$0xff] %v49
    // Predicated region
    $region18: #{tpu_custom_call.1} parent=1 // pred_check
      _
    $region19: #{tpu_custom_call.1} parent=1 // pred_check_branch
      %53 = sbr.rel (0) target = $region21
    $region20: #{tpu_custom_call.1} parent=1 // pred_region
      %s55 = ssub.s32 256, 256
      %56 = vsyncadd [#allocation4], %s55
      %s57 = sshll.u32 [#allocation7], 4
      %s58 = int_to_ptr.vmem [resolvable:$true] %s57
      %63 = dma.vmem_to_hbm [thread:$0]  %s58, 256, %s2, [#allocation4], 128, 128, 8
    $region21: #{tpu_custom_call.1} parent=1 // pred_fallthru
      _
    // Predicated region
    $region22: #{tpu_custom_call.1} parent=1 // pred_check
      _
    $region23: #{tpu_custom_call.1} parent=1 // pred_check_branch
      %65 = sbr.rel (0) target = $region25
    $region24: #{tpu_custom_call.1} parent=1 // pred_region
      %66 = dma.done [#allocation4], 256
    $region25: #{tpu_custom_call.1} parent=1 // pred_fallthru
      _
    %67 = vsyncpa [#allocation3], 1
    %68 = vsyncpa [#allocation6], 1
    %69 = vsyncpa [#allocation4], 1

</llo_original>
